<compile_context>
chip_gen: v7x
topology: tpu7x:2x2x1
jax: 0.10.0
libtpu: 0.0.40
codegen_flags: <defaults>
</compile_context>

<pallas_src>
import functools

import jax
import jax.numpy as jnp
from jax.experimental import pallas as pl
from jax.experimental.pallas import tpu as pltpu


# ----------------------------------------------------------------------------
# Fused kernel: block-diag slice MLPs + combine MLP, all in one invocation
# ----------------------------------------------------------------------------
def _fused_kernel(nhid_s, nhid_c,
                  x_ref,
                  sw1_ref, sb1_ref, swh_ref, sbh_ref, swo_ref, sbo_ref,
                  cw1_ref, cb1_ref, cwh_ref, cbh_ref, cwo_ref, cbo_ref,
                  o_ref):
    # ---- slice stage (block-diagonal over series x slice) -------------------
    # x_ref: (B, S*P*Din)   sw1: (S*P*Din, S*P*H)   swh: (nhid_s, S*P*H, S*P*H)
    # swo: (S*P*H, S*P*M)
    h = jnp.dot(x_ref[...], sw1_ref[...],
                preferred_element_type=jnp.float32) + sb1_ref[...]
    h = jnp.maximum(h, 0.0)
    for l in range(nhid_s):
        h = jnp.dot(h, swh_ref[l],
                    preferred_element_type=jnp.float32) + sbh_ref[l]
        h = jnp.maximum(h, 0.0)
    so = jnp.dot(h, swo_ref[...],
                 preferred_element_type=jnp.float32) + sbo_ref[...]
    # so: (B, S*P*M), already in (series, slice, feature) order == torch.cat.

    # ---- combine stage ------------------------------------------------------
    h = jnp.dot(so, cw1_ref[...],
                preferred_element_type=jnp.float32) + cb1_ref[...]
    h = jnp.maximum(h, 0.0)
    for l in range(nhid_c):
        h = jnp.dot(h, cwh_ref[l],
                    preferred_element_type=jnp.float32) + cbh_ref[l]
        h = jnp.maximum(h, 0.0)
    out = jnp.dot(h, cwo_ref[...],
                  preferred_element_type=jnp.float32) + cbo_ref[...]
    o_ref[...] = out.astype(o_ref.dtype)


def run_fused(x_bd, slice_params_bd, combine_params):
    sW1, sb1, sWh, sbh, sWo, sbo = slice_params_bd
    cW1, cb1, cWh, cbh, cWo, cbo = combine_params
    B, Dfull = x_bd.shape
    nhid_s, nhid_c = sWh.shape[0], cWh.shape[0]
    Hs = sW1.shape[-1]          # S*P*slice_hidden
    Ms = sWo.shape[-1]          # S*P*mlp_output == combine input size
    Hc = cW1.shape[-1]
    O = cWo.shape[-1]

    kernel = functools.partial(_fused_kernel, nhid_s, nhid_c)

    def full(shape):
        return pl.BlockSpec(shape, lambda i, _s=shape: (0,) * len(_s))

    # Everything fits trivially in VMEM at these sizes (a few hundred KB);
    # whole-array blocks, single grid step.
    # TODO(synk): if hidden/patch_size/B ever scale up, re-tile against v7x's
    # 64 MiB VMEM and consider bf16 weights/activations for the MXU.
    return pl.pallas_call(
        kernel,
        out_shape=jax.ShapeDtypeStruct((B, O), jnp.float32),
        grid=(1,),
        in_specs=[
            full((B, Dfull)),
            full((Dfull, Hs)), full((1, Hs)),
            full((nhid_s, Hs, Hs)), full((nhid_s, 1, Hs)),
            full((Hs, Ms)), full((1, Ms)),
            full((Ms, Hc)), full((1, Hc)),
            full((nhid_c, Hc, Hc)), full((nhid_c, 1, Hc)),
            full((Hc, O)), full((1, O)),
        ],
        out_specs=full((B, O)),
        compiler_params=pltpu.CompilerParams(
            dimension_semantics=("arbitrary",)),
    )(x_bd, sW1, sb1, sWh, sbh, sWo, sbo, cW1, cb1, cWh, cbh, cWo, cbo)


# ----------------------------------------------------------------------------
# One-time weight packing: per-slice weights -> block-diagonal matrices
# ----------------------------------------------------------------------------
def _block_diag(blocks):
    rows = sum(b.shape[0] for b in blocks)
    cols = sum(b.shape[1] for b in blocks)
    out = jnp.zeros((rows, cols), blocks[0].dtype)
    r = c = 0
    for b in blocks:
        out = out.at[r:r + b.shape[0], c:c + b.shape[1]].set(b)
        r += b.shape[0]
        c += b.shape[1]
    return out


def pack_slice_params_blockdiag(slice_params, *, n_series, patch_size):
    """Pack per-slice MLP weights into block-diag form over (series, slice).

    Replicates the PyTorch shadowing bug: slice weight h is reused for every
    series, so the block for g = s*patch_size + h is slice_params[...][h].
    """
    sw1, sb1, swh, sbh, swo, sbo = slice_params
    order = [h for _ in range(n_series) for h in range(patch_size)]
    W1 = _block_diag([sw1[h] for h in order])                       # (SPDin, SPH)
    b1 = jnp.concatenate([sb1[h] for h in order], axis=-1)          # (1, SPH)
    nhid = swh.shape[0]
    Wh = jnp.stack([_block_diag([swh[l, h] for h in order])
                    for l in range(nhid)])                          # (nhid, SPH, SPH)
    bh = jnp.stack([jnp.concatenate([sbh[l, h] for h in order], axis=-1)
                    for l in range(nhid)])                          # (nhid, 1, SPH)
    Wo = _block_diag([swo[h] for h in order])                       # (SPH, SPM)
    bo = jnp.concatenate([sbo[h] for h in order], axis=-1)          # (1, SPM)
    return W1, b1, Wh, bh, Wo, bo


# ----------------------------------------------------------------------------
# Full forward
# ----------------------------------------------------------------------------
def slicemlp_forward(x, slice_params_bd, combine_params, *, n_projections,
                     patch_size, n_series, learn_residual=False):
    B = x.shape[0]
    # Single fused rearrangement: (B, S*np, Ph, Pw) -> (B, S*Ph*np*Pw)
    # Row layout: block g = s*Ph + h holds xp[b, h, s*np:(s+1)*np, :] flattened
    # (projection-major, width-inner) -- exactly the PyTorch slice input.
    x_bd = x.reshape(B, n_series, n_projections, patch_size, patch_size)
    x_bd = jnp.transpose(x_bd, (0, 1, 3, 2, 4)).reshape(B, -1)

    out = run_fused(x_bd, slice_params_bd, combine_params)

    if learn_residual:
        mid = x[:, :n_projections, patch_size // 2, patch_size // 2]
        out = out + jnp.mean(mid, axis=1, keepdims=True)
    return out


# ----------------------------------------------------------------------------
# Deterministic parameter init (PyTorch-style Linear init)
# ----------------------------------------------------------------------------
def _init_linear(key, fan_in, fan_out):
    kw, kb = jax.random.split(key)
    scale = 1.0 / jnp.sqrt(jnp.float32(fan_in))
    w = jax.random.uniform(kw, (fan_in, fan_out), jnp.float32, -scale, scale)
    b = jax.random.uniform(kb, (fan_out,), jnp.float32, -scale, scale)
    return w, b


def init_slice_params(key, patch_size, din, hidden, mlp_output, n_layers):
    assert n_layers >= 3, "this implementation needs >=1 hidden linear layer"
    nhid = n_layers - 2
    keys = jax.random.split(key, patch_size)
    w1s, b1s, whs, bhs, wos, bos = [], [], [], [], [], []
    for p in range(patch_size):
        ks = jax.random.split(keys[p], nhid + 2)
        w1, b1 = _init_linear(ks[0], din, hidden)
        wl, bl = [], []
        for l in range(nhid):
            w, b = _init_linear(ks[1 + l], hidden, hidden)
            wl.append(w)
            bl.append(b.reshape(1, hidden))
        wo, bo = _init_linear(ks[-1], hidden, mlp_output)
        w1s.append(w1)
        b1s.append(b1.reshape(1, hidden))
        whs.append(jnp.stack(wl))
        bhs.append(jnp.stack(bl))
        wos.append(wo)
        bos.append(bo.reshape(1, mlp_output))
    return (jnp.stack(w1s),                 # (P, Din, H)
            jnp.stack(b1s),                 # (P, 1, H)
            jnp.stack(whs, axis=1),         # (nhid, P, H, H)
            jnp.stack(bhs, axis=1),         # (nhid, P, 1, H)
            jnp.stack(wos),                 # (P, H, M)
            jnp.stack(bos))                 # (P, 1, M)


def init_combine_params(key, din, hidden, out_dim, n_layers):
    assert n_layers >= 3
    nhid = n_layers - 2
    ks = jax.random.split(key, nhid + 2)
    w1, b1 = _init_linear(ks[0], din, hidden)
    whs, bhs = [], []
    for l in range(nhid):
        w, b = _init_linear(ks[1 + l], hidden, hidden)
        whs.append(w)
        bhs.append(b.reshape(1, hidden))
    wo, bo = _init_linear(ks[-1], hidden, out_dim)
    return (w1, b1.reshape(1, hidden), jnp.stack(whs), jnp.stack(bhs),
            wo, bo.reshape(1, out_dim))


# ----------------------------------------------------------------------------
# Pure-JAX reference (mirrors the PyTorch forward, including the index bug)
# ----------------------------------------------------------------------------
def _mlp_ref(x, w1, b1, wh, bh, wo, bo):
    h = jnp.maximum(x @ w1 + b1, 0.0)
    for l in range(wh.shape[0]):
        h = jnp.maximum(h @ wh[l] + bh[l], 0.0)
    return h @ wo + bo


def reference_forward(x, slice_params, combine_params, *, n_projections,
                      patch_size, n_series, learn_residual=False):
    B = x.shape[0]
    sw1, sb1, swh, sbh, swo, sbo = slice_params
    xp = jnp.transpose(x, (0, 2, 1, 3))
    series_outs = []
    for s in range(n_series):
        sub = xp[:, :, s * n_projections:(s + 1) * n_projections, :]
        sub = sub.reshape(B, patch_size, patch_size * n_projections)
        outs = []
        for h in range(patch_size):   # slice_mlps[h] reused for every series
            outs.append(_mlp_ref(sub[:, h], sw1[h], sb1[h], swh[:, h],
                                 sbh[:, h], swo[h], sbo[h]))
        series_outs.append(jnp.concatenate(outs, axis=1))
    x_op = jnp.concatenate(series_outs, axis=1)
    out = _mlp_ref(x_op, *combine_params)
    if learn_residual:
        mid = x[:, :n_projections, patch_size // 2, patch_size // 2]
        out = out + jnp.mean(mid, axis=1, keepdims=True)
    return out


# ----------------------------------------------------------------------------
if __name__ == "__main__":
    # Small config consistent with the module
    B = 2
    n_projections = 4
    patch_size = 4
    n_series = 2
    mlp_output = 8
    slice_hidden = 32
    slice_layers = 3
    combine_hidden = 32
    combine_layers = 3
    output_size = 1
    learn_residual = False

    key = jax.random.PRNGKey(0)
    kx, ks, kc = jax.random.split(key, 3)

    x = jax.random.normal(
        kx, (B, n_series * n_projections, patch_size, patch_size), jnp.float32)

    din_slice = patch_size * n_projections
    din_combine = patch_size * mlp_output * n_series
    slice_params = init_slice_params(ks, patch_size, din_slice, slice_hidden,
                                     mlp_output, slice_layers)
    combine_params = init_combine_params(kc, din_combine, combine_hidden,
                                         output_size, combine_layers)

    # One-time weight packing (would be done at model-load time in practice).
    slice_params_bd = pack_slice_params_blockdiag(
        slice_params, n_series=n_series, patch_size=patch_size)
    slice_params_bd = jax.tree_util.tree_map(jax.block_until_ready,
                                             slice_params_bd)

    fwd = jax.jit(functools.partial(
        slicemlp_forward,
        n_projections=n_projections, patch_size=patch_size,
        n_series=n_series, learn_residual=learn_residual))

    out = fwd(x, slice_params_bd, combine_params)
    out = jax.block_until_ready(out)

    ref = reference_forward(x, slice_params, combine_params,
                            n_projections=n_projections,
                            patch_size=patch_size, n_series=n_series,
                            learn_residual=learn_residual)
    ref = jax.block_until_ready(ref)

    assert out.shape == (B, output_size), out.shape
    assert jnp.allclose(out, ref, rtol=1e-4, atol=1e-4), (out, ref)
    print("KERNEL_OK")
</pallas_src>

<mosaic_0001>
module attributes {stable_mosaic.version = 11 : i64} {
  func.func @_fused_kernel(%arg0: i32, %arg1: memref<2x128xf32, #tpu.memory_space<vmem>>, %arg2: memref<128x256xf32, #tpu.memory_space<vmem>>, %arg3: memref<1x256xf32, #tpu.memory_space<vmem>>, %arg4: memref<1x256x256xf32, #tpu.memory_space<vmem>>, %arg5: memref<1x1x256xf32, #tpu.memory_space<vmem>>, %arg6: memref<256x64xf32, #tpu.memory_space<vmem>>, %arg7: memref<1x64xf32, #tpu.memory_space<vmem>>, %arg8: memref<64x32xf32, #tpu.memory_space<vmem>>, %arg9: memref<1x32xf32, #tpu.memory_space<vmem>>, %arg10: memref<1x32x32xf32, #tpu.memory_space<vmem>>, %arg11: memref<1x1x32xf32, #tpu.memory_space<vmem>>, %arg12: memref<32x1xf32, #tpu.memory_space<vmem>>, %arg13: memref<1x1xf32, #tpu.memory_space<vmem>>, %arg14: memref<2x1xf32, #tpu.memory_space<vmem>>) attributes {dimension_semantics = [#tpu.dimension_semantics<arbitrary>], iteration_bounds = array<i64: 1>, scalar_prefetch = 0 : i64, scratch_operands = 0 : i64, tpu.core_type = #tpu.core_type<tc>, window_params = [{pipeline_mode = #tpu.pipeline_mode<synchronous>, transform_indices = @transform_0, window_bounds = array<i64: 2, 128>}, {pipeline_mode = #tpu.pipeline_mode<synchronous>, transform_indices = @transform_1, window_bounds = array<i64: 128, 256>}, {pipeline_mode = #tpu.pipeline_mode<synchronous>, transform_indices = @transform_2, window_bounds = array<i64: 1, 256>}, {pipeline_mode = #tpu.pipeline_mode<synchronous>, transform_indices = @transform_3, window_bounds = array<i64: 1, 256, 256>}, {pipeline_mode = #tpu.pipeline_mode<synchronous>, transform_indices = @transform_4, window_bounds = array<i64: 1, 1, 256>}, {pipeline_mode = #tpu.pipeline_mode<synchronous>, transform_indices = @transform_5, window_bounds = array<i64: 256, 64>}, {pipeline_mode = #tpu.pipeline_mode<synchronous>, transform_indices = @transform_6, window_bounds = array<i64: 1, 64>}, {pipeline_mode = #tpu.pipeline_mode<synchronous>, transform_indices = @transform_7, window_bounds = array<i64: 64, 32>}, {pipeline_mode = #tpu.pipeline_mode<synchronous>, transform_indices = @transform_8, window_bounds = array<i64: 1, 32>}, {pipeline_mode = #tpu.pipeline_mode<synchronous>, transform_indices = @transform_9, window_bounds = array<i64: 1, 32, 32>}, {pipeline_mode = #tpu.pipeline_mode<synchronous>, transform_indices = @transform_10, window_bounds = array<i64: 1, 1, 32>}, {pipeline_mode = #tpu.pipeline_mode<synchronous>, transform_indices = @transform_11, window_bounds = array<i64: 32, 1>}, {pipeline_mode = #tpu.pipeline_mode<synchronous>, transform_indices = @transform_12, window_bounds = array<i64: 1, 1>}, {pipeline_mode = #tpu.pipeline_mode<synchronous>, transform_indices = @transform_13, window_bounds = array<i64: 2, 1>}]} {
    %c0 = arith.constant 0 : index
    %c0_0 = arith.constant 0 : index
    %0 = vector.load %arg1[%c0, %c0_0] : memref<2x128xf32, #tpu.memory_space<vmem>>, vector<2x128xf32>
    %c0_1 = arith.constant 0 : index
    %c0_2 = arith.constant 0 : index
    %1 = vector.load %arg2[%c0_1, %c0_2] : memref<128x256xf32, #tpu.memory_space<vmem>>, vector<128x256xf32>
    %cst = arith.constant dense<0.000000e+00> : vector<2x256xf32>
    %2 = tpu.matmul %0, %1, %cst {dimension_numbers = #tpu.dot_dimension_numbers<[1], [0], [0], [1], [0, 0, 1, 1], [], []>} : vector<2x128xf32>, vector<128x256xf32>, vector<2x256xf32> -> vector<2x256xf32>
    %c0_3 = arith.constant 0 : index
    %c0_4 = arith.constant 0 : index
    %3 = vector.load %arg3[%c0_3, %c0_4] : memref<1x256xf32, #tpu.memory_space<vmem>>, vector<1x256xf32>
    %4 = vector.broadcast %3 : vector<1x256xf32> to vector<2x256xf32>
    %5 = arith.addf %2, %4 : vector<2x256xf32>
    %cst_5 = arith.constant 0.000000e+00 : f32
    %6 = vector.broadcast %cst_5 : f32 to vector<2x256xf32>
    %7 = arith.maximumf %5, %6 : vector<2x256xf32>
    %c0_6 = arith.constant 0 : index
    %c0_7 = arith.constant 0 : index
    %c0_8 = arith.constant 0 : index
    %8 = vector.load %arg4[%c0_6, %c0_7, %c0_8] : memref<1x256x256xf32, #tpu.memory_space<vmem>>, vector<1x256x256xf32>
    %9 = vector.shape_cast %8 : vector<1x256x256xf32> to vector<256x256xf32>
    %cst_9 = arith.constant dense<0.000000e+00> : vector<2x256xf32>
    %10 = tpu.matmul %7, %9, %cst_9 {dimension_numbers = #tpu.dot_dimension_numbers<[1], [0], [0], [1], [0, 0, 1, 1], [], []>} : vector<2x256xf32>, vector<256x256xf32>, vector<2x256xf32> -> vector<2x256xf32>
    %c0_10 = arith.constant 0 : index
    %c0_11 = arith.constant 0 : index
    %c0_12 = arith.constant 0 : index
    %11 = vector.load %arg5[%c0_10, %c0_11, %c0_12] : memref<1x1x256xf32, #tpu.memory_space<vmem>>, vector<1x1x256xf32>
    %12 = vector.shape_cast %11 : vector<1x1x256xf32> to vector<1x256xf32>
    %13 = vector.broadcast %12 : vector<1x256xf32> to vector<2x256xf32>
    %14 = arith.addf %10, %13 : vector<2x256xf32>
    %cst_13 = arith.constant 0.000000e+00 : f32
    %15 = vector.broadcast %cst_13 : f32 to vector<2x256xf32>
    %16 = arith.maximumf %14, %15 : vector<2x256xf32>
    %c0_14 = arith.constant 0 : index
    %c0_15 = arith.constant 0 : index
    %17 = vector.load %arg6[%c0_14, %c0_15] : memref<256x64xf32, #tpu.memory_space<vmem>>, vector<256x64xf32>
    %cst_16 = arith.constant dense<0.000000e+00> : vector<2x64xf32>
    %18 = tpu.matmul %16, %17, %cst_16 {dimension_numbers = #tpu.dot_dimension_numbers<[1], [0], [0], [1], [0, 0, 1, 1], [], []>} : vector<2x256xf32>, vector<256x64xf32>, vector<2x64xf32> -> vector<2x64xf32>
    %c0_17 = arith.constant 0 : index
    %c0_18 = arith.constant 0 : index
    %19 = vector.load %arg7[%c0_17, %c0_18] : memref<1x64xf32, #tpu.memory_space<vmem>>, vector<1x64xf32>
    %20 = vector.broadcast %19 : vector<1x64xf32> to vector<2x64xf32>
    %21 = arith.addf %18, %20 : vector<2x64xf32>
    %c0_19 = arith.constant 0 : index
    %c0_20 = arith.constant 0 : index
    %22 = vector.load %arg8[%c0_19, %c0_20] : memref<64x32xf32, #tpu.memory_space<vmem>>, vector<64x32xf32>
    %cst_21 = arith.constant dense<0.000000e+00> : vector<2x32xf32>
    %23 = tpu.matmul %21, %22, %cst_21 {dimension_numbers = #tpu.dot_dimension_numbers<[1], [0], [0], [1], [0, 0, 1, 1], [], []>} : vector<2x64xf32>, vector<64x32xf32>, vector<2x32xf32> -> vector<2x32xf32>
    %c0_22 = arith.constant 0 : index
    %c0_23 = arith.constant 0 : index
    %24 = vector.load %arg9[%c0_22, %c0_23] : memref<1x32xf32, #tpu.memory_space<vmem>>, vector<1x32xf32>
    %25 = vector.broadcast %24 : vector<1x32xf32> to vector<2x32xf32>
    %26 = arith.addf %23, %25 : vector<2x32xf32>
    %cst_24 = arith.constant 0.000000e+00 : f32
    %27 = vector.broadcast %cst_24 : f32 to vector<2x32xf32>
    %28 = arith.maximumf %26, %27 : vector<2x32xf32>
    %c0_25 = arith.constant 0 : index
    %c0_26 = arith.constant 0 : index
    %c0_27 = arith.constant 0 : index
    %29 = vector.load %arg10[%c0_25, %c0_26, %c0_27] : memref<1x32x32xf32, #tpu.memory_space<vmem>>, vector<1x32x32xf32>
    %30 = vector.shape_cast %29 : vector<1x32x32xf32> to vector<32x32xf32>
    %cst_28 = arith.constant dense<0.000000e+00> : vector<2x32xf32>
    %31 = tpu.matmul %28, %30, %cst_28 {dimension_numbers = #tpu.dot_dimension_numbers<[1], [0], [0], [1], [0, 0, 1, 1], [], []>} : vector<2x32xf32>, vector<32x32xf32>, vector<2x32xf32> -> vector<2x32xf32>
    %c0_29 = arith.constant 0 : index
    %c0_30 = arith.constant 0 : index
    %c0_31 = arith.constant 0 : index
    %32 = vector.load %arg11[%c0_29, %c0_30, %c0_31] : memref<1x1x32xf32, #tpu.memory_space<vmem>>, vector<1x1x32xf32>
    %33 = vector.shape_cast %32 : vector<1x1x32xf32> to vector<1x32xf32>
    %34 = vector.broadcast %33 : vector<1x32xf32> to vector<2x32xf32>
    %35 = arith.addf %31, %34 : vector<2x32xf32>
    %cst_32 = arith.constant 0.000000e+00 : f32
    %36 = vector.broadcast %cst_32 : f32 to vector<2x32xf32>
    %37 = arith.maximumf %35, %36 : vector<2x32xf32>
    %c0_33 = arith.constant 0 : index
    %c0_34 = arith.constant 0 : index
    %38 = vector.load %arg12[%c0_33, %c0_34] : memref<32x1xf32, #tpu.memory_space<vmem>>, vector<32x1xf32>
    %cst_35 = arith.constant dense<0.000000e+00> : vector<2x1xf32>
    %39 = tpu.matmul %37, %38, %cst_35 {dimension_numbers = #tpu.dot_dimension_numbers<[1], [0], [0], [1], [0, 0, 1, 1], [], []>} : vector<2x32xf32>, vector<32x1xf32>, vector<2x1xf32> -> vector<2x1xf32>
    %c0_36 = arith.constant 0 : index
    %c0_37 = arith.constant 0 : index
    %40 = vector.load %arg13[%c0_36, %c0_37] : memref<1x1xf32, #tpu.memory_space<vmem>>, vector<1x1xf32>
    %41 = vector.broadcast %40 : vector<1x1xf32> to vector<2x1xf32>
    %42 = arith.addf %39, %41 : vector<2x1xf32>
    %c0_38 = arith.constant 0 : index
    %c0_39 = arith.constant 0 : index
    %43 = vector.load %arg14[%c0_38, %c0_39] : memref<2x1xf32, #tpu.memory_space<vmem>>, vector<2x1xf32>
    tpu.vector_store %arg14[%c0_38, %c0_39], %42 {strides = array<i32>} : memref<2x1xf32, #tpu.memory_space<vmem>>, vector<2x1xf32>,
    return
  }
  func.func @transform_0(%arg0: i32) -> (i32, i32) {
    %c0_i32 = arith.constant 0 : i32
    %c0_i32_0 = arith.constant 0 : i32
    %c0_i32_1 = arith.constant 0 : i32
    return %c0_i32, %c0_i32_0 : i32, i32
  }
  func.func @transform_1(%arg0: i32) -> (i32, i32) {
    %c0_i32 = arith.constant 0 : i32
    %c0_i32_0 = arith.constant 0 : i32
    %c0_i32_1 = arith.constant 0 : i32
    return %c0_i32, %c0_i32_0 : i32, i32
  }
  func.func @transform_2(%arg0: i32) -> (i32, i32) {
    %c0_i32 = arith.constant 0 : i32
    %c0_i32_0 = arith.constant 0 : i32
    %c0_i32_1 = arith.constant 0 : i32
    return %c0_i32, %c0_i32_0 : i32, i32
  }
  func.func @transform_3(%arg0: i32) -> (i32, i32, i32) {
    %c0_i32 = arith.constant 0 : i32
    %c0_i32_0 = arith.constant 0 : i32
    %c0_i32_1 = arith.constant 0 : i32
    %c0_i32_2 = arith.constant 0 : i32
    return %c0_i32, %c0_i32_0, %c0_i32_1 : i32, i32, i32
  }
  func.func @transform_4(%arg0: i32) -> (i32, i32, i32) {
    %c0_i32 = arith.constant 0 : i32
    %c0_i32_0 = arith.constant 0 : i32
    %c0_i32_1 = arith.constant 0 : i32
    %c0_i32_2 = arith.constant 0 : i32
    return %c0_i32, %c0_i32_0, %c0_i32_1 : i32, i32, i32
  }
  func.func @transform_5(%arg0: i32) -> (i32, i32) {
    %c0_i32 = arith.constant 0 : i32
    %c0_i32_0 = arith.constant 0 : i32
    %c0_i32_1 = arith.constant 0 : i32
    return %c0_i32, %c0_i32_0 : i32, i32
  }
  func.func @transform_6(%arg0: i32) -> (i32, i32) {
    %c0_i32 = arith.constant 0 : i32
    %c0_i32_0 = arith.constant 0 : i32
    %c0_i32_1 = arith.constant 0 : i32
    return %c0_i32, %c0_i32_0 : i32, i32
  }
  func.func @transform_7(%arg0: i32) -> (i32, i32) {
    %c0_i32 = arith.constant 0 : i32
    %c0_i32_0 = arith.constant 0 : i32
    %c0_i32_1 = arith.constant 0 : i32
    return %c0_i32, %c0_i32_0 : i32, i32
  }
  func.func @transform_8(%arg0: i32) -> (i32, i32) {
    %c0_i32 = arith.constant 0 : i32
    %c0_i32_0 = arith.constant 0 : i32
    %c0_i32_1 = arith.constant 0 : i32
    return %c0_i32, %c0_i32_0 : i32, i32
  }
  func.func @transform_9(%arg0: i32) -> (i32, i32, i32) {
    %c0_i32 = arith.constant 0 : i32
    %c0_i32_0 = arith.constant 0 : i32
    %c0_i32_1 = arith.constant 0 : i32
    %c0_i32_2 = arith.constant 0 : i32
    return %c0_i32, %c0_i32_0, %c0_i32_1 : i32, i32, i32
  }
  func.func @transform_10(%arg0: i32) -> (i32, i32, i32) {
    %c0_i32 = arith.constant 0 : i32
    %c0_i32_0 = arith.constant 0 : i32
    %c0_i32_1 = arith.constant 0 : i32
    %c0_i32_2 = arith.constant 0 : i32
    return %c0_i32, %c0_i32_0, %c0_i32_1 : i32, i32, i32
  }
  func.func @transform_11(%arg0: i32) -> (i32, i32) {
    %c0_i32 = arith.constant 0 : i32
    %c0_i32_0 = arith.constant 0 : i32
    %c0_i32_1 = arith.constant 0 : i32
    return %c0_i32, %c0_i32_0 : i32, i32
  }
  func.func @transform_12(%arg0: i32) -> (i32, i32) {
    %c0_i32 = arith.constant 0 : i32
    %c0_i32_0 = arith.constant 0 : i32
    %c0_i32_1 = arith.constant 0 : i32
    return %c0_i32, %c0_i32_0 : i32, i32
  }
  func.func @transform_13(%arg0: i32) -> (i32, i32) {
    %c0_i32 = arith.constant 0 : i32
    %c0_i32_0 = arith.constant 0 : i32
    %c0_i32_1 = arith.constant 0 : i32
    return %c0_i32, %c0_i32_0 : i32, i32
  }
}

</mosaic_0001>

<llo_original>
// kernel: slicemlp_forward.1
$region0: #{slicemlp_forward.1}
  #allocation0 [shape = 'u32[]', space=smem, size = 0x4, offset = 0x4, fixed_abs, tag = 'smem constant byte address 0x4 - core index']
  #allocation1 [shape = 'u32[144,128]{1,0:T(1,128)}', space=vmem, size = 0x12000, scoped, tag = 'internal scratch']
  #allocation2 [shape = 'f32[1,1]{1,0:T(1,128)S(1)}', space=vmem, size = 0x200, scoped, tag = 'scoped memory for slicemlp_forward.1']
  %s0 = inlined_call_operand.vmem [shape: f32[2,128], index: 0, kind: input, shape index: {}]
  %s1 = inlined_call_operand.vmem [shape: f32[128,256], index: 1, kind: input, shape index: {}]
  %s2 = inlined_call_operand.vmem [shape: f32[1,256], index: 2, kind: input, shape index: {}]
  %s3 = inlined_call_operand.vmem [shape: f32[1,256,256], index: 3, kind: input, shape index: {}]
  %s4 = inlined_call_operand.vmem [shape: f32[1,1,256], index: 4, kind: input, shape index: {}]
  %s5 = inlined_call_operand.vmem [shape: f32[256,64], index: 5, kind: input, shape index: {}]
  %s6 = inlined_call_operand.vmem [shape: f32[1,64], index: 6, kind: input, shape index: {}]
  %s7 = inlined_call_operand.vmem [shape: f32[64,32], index: 7, kind: input, shape index: {}]
  %s8 = inlined_call_operand.vmem [shape: f32[1,32], index: 8, kind: input, shape index: {}]
  %s9 = inlined_call_operand.vmem [shape: f32[1,32,32], index: 9, kind: input, shape index: {}]
  %s10 = inlined_call_operand.vmem [shape: f32[1,1,32], index: 10, kind: input, shape index: {}]
  %s11 = inlined_call_operand.vmem [shape: f32[32,1], index: 11, kind: input, shape index: {}]
  %s12 = inlined_call_operand.<no memory space> [shape: f32[1,1], index: 12, kind: input, shape index: {}]
  %s13 = inlined_call_operand.vmem [shape: f32[2,1], index: 13, kind: output, shape index: {}]
  %s14 = sld [smem:[#allocation0]]
  $region62: #{slicemlp_forward.1} parent=0
    _
  %s16 = ssub.s32 1, %s14
  %s17 = scalar_select 0, %s16, %s14
  %v18 = vstv %s12
  %19 = vst [vmem:[#allocation2] sm:$0x1] %v18
  // Predicated region
  $region2: #{slicemlp_forward.1} parent=0 // pred_check
    _
  $region3: #{slicemlp_forward.1} parent=0 // pred_check_branch
    %21 = sbr.rel (0) target = $region5
  $region4: #{slicemlp_forward.1} parent=0 // pred_region
    _
  $region5: #{slicemlp_forward.1} parent=0 // pred_fallthru
    _
  // Predicated region
  $region6: #{slicemlp_forward.1} parent=0 // pred_check
    _
  $region7: #{slicemlp_forward.1} parent=0 // pred_check_branch
    %23 = sbr.rel (0) target = $region9
  $region8: #{slicemlp_forward.1} parent=0 // pred_region
    _
  $region9: #{slicemlp_forward.1} parent=0 // pred_fallthru
    _
  // Predicated region
  $region10: #{slicemlp_forward.1} parent=0 // pred_check
    _
  $region11: #{slicemlp_forward.1} parent=0 // pred_check_branch
    %25 = sbr.rel (0) target = $region13
  $region12: #{slicemlp_forward.1} parent=0 // pred_region
    _
  $region13: #{slicemlp_forward.1} parent=0 // pred_fallthru
    _
  // Predicated region
  $region14: #{slicemlp_forward.1} parent=0 // pred_check
    _
  $region15: #{slicemlp_forward.1} parent=0 // pred_check_branch
    %27 = sbr.rel (0) target = $region17
  $region16: #{slicemlp_forward.1} parent=0 // pred_region
    _
  $region17: #{slicemlp_forward.1} parent=0 // pred_fallthru
    _
  // Predicated region
  $region18: #{slicemlp_forward.1} parent=0 // pred_check
    _
  $region19: #{slicemlp_forward.1} parent=0 // pred_check_branch
    %29 = sbr.rel (0) target = $region21
  $region20: #{slicemlp_forward.1} parent=0 // pred_region
    _
  $region21: #{slicemlp_forward.1} parent=0 // pred_fallthru
    _
  // Predicated region
  $region22: #{slicemlp_forward.1} parent=0 // pred_check
    _
  $region23: #{slicemlp_forward.1} parent=0 // pred_check_branch
    %31 = sbr.rel (0) target = $region25
  $region24: #{slicemlp_forward.1} parent=0 // pred_region
    _
  $region25: #{slicemlp_forward.1} parent=0 // pred_fallthru
    _
  // Predicated region
  $region26: #{slicemlp_forward.1} parent=0 // pred_check
    _
  $region27: #{slicemlp_forward.1} parent=0 // pred_check_branch
    %33 = sbr.rel (0) target = $region29
  $region28: #{slicemlp_forward.1} parent=0 // pred_region
    _
  $region29: #{slicemlp_forward.1} parent=0 // pred_fallthru
    _
  // Predicated region
  $region30: #{slicemlp_forward.1} parent=0 // pred_check
    _
  $region31: #{slicemlp_forward.1} parent=0 // pred_check_branch
    %35 = sbr.rel (0) target = $region33
  $region32: #{slicemlp_forward.1} parent=0 // pred_region
    _
  $region33: #{slicemlp_forward.1} parent=0 // pred_fallthru
    _
  // Predicated region
  $region34: #{slicemlp_forward.1} parent=0 // pred_check
    _
  $region35: #{slicemlp_forward.1} parent=0 // pred_check_branch
    %37 = sbr.rel (0) target = $region37
  $region36: #{slicemlp_forward.1} parent=0 // pred_region
    _
  $region37: #{slicemlp_forward.1} parent=0 // pred_fallthru
    _
  // Predicated region
  $region38: #{slicemlp_forward.1} parent=0 // pred_check
    _
  $region39: #{slicemlp_forward.1} parent=0 // pred_check_branch
    %39 = sbr.rel (0) target = $region41
  $region40: #{slicemlp_forward.1} parent=0 // pred_region
    _
  $region41: #{slicemlp_forward.1} parent=0 // pred_fallthru
    _
  // Predicated region
  $region42: #{slicemlp_forward.1} parent=0 // pred_check
    _
  $region43: #{slicemlp_forward.1} parent=0 // pred_check_branch
    %41 = sbr.rel (0) target = $region45
  $region44: #{slicemlp_forward.1} parent=0 // pred_region
    _
  $region45: #{slicemlp_forward.1} parent=0 // pred_fallthru
    _
  // Predicated region
  $region46: #{slicemlp_forward.1} parent=0 // pred_check
    _
  $region47: #{slicemlp_forward.1} parent=0 // pred_check_branch
    %43 = sbr.rel (0) target = $region49
  $region48: #{slicemlp_forward.1} parent=0 // pred_region
    _
  $region49: #{slicemlp_forward.1} parent=0 // pred_fallthru
    _
  // Predicated region
  $region50: #{slicemlp_forward.1} parent=0 // pred_check
    _
  $region51: #{slicemlp_forward.1} parent=0 // pred_check_branch
    %45 = sbr.rel (0) target = $region53
  $region52: #{slicemlp_forward.1} parent=0 // pred_region
    _
  $region53: #{slicemlp_forward.1} parent=0 // pred_fallthru
    _
  %v46 = vld [vmem:[%s0] sm:$0x3]
  %v47 = vld [vmem:[%s1] sm:$0xff]
  %v48 = vld [vmem:[%s1 + $0x8] sm:$0xff]
  %v49 = vld [vmem:[%s1 + $0x10] sm:$0xff]
  %v50 = vld [vmem:[%s1 + $0x18] sm:$0xff]
  %v51 = vld [vmem:[%s1 + $0x20] sm:$0xff]
  %v52 = vld [vmem:[%s1 + $0x28] sm:$0xff]
  %v53 = vld [vmem:[%s1 + $0x30] sm:$0xff]
  %v54 = vld [vmem:[%s1 + $0x38] sm:$0xff]
  %v55 = vld [vmem:[%s1 + $0x40] sm:$0xff]
  %v56 = vld [vmem:[%s1 + $0x48] sm:$0xff]
  %v57 = vld [vmem:[%s1 + $0x50] sm:$0xff]
  %v58 = vld [vmem:[%s1 + $0x58] sm:$0xff]
  %v59 = vld [vmem:[%s1 + $0x60] sm:$0xff]
  %v60 = vld [vmem:[%s1 + $0x68] sm:$0xff]
  %v61 = vld [vmem:[%s1 + $0x70] sm:$0xff]
  %v62 = vld [vmem:[%s1 + $0x78] sm:$0xff]
  %v63 = vld [vmem:[%s1 + $0x80] sm:$0xff]
  %v64 = vld [vmem:[%s1 + $0x88] sm:$0xff]
  %v65 = vld [vmem:[%s1 + $0x90] sm:$0xff]
  %v66 = vld [vmem:[%s1 + $0x98] sm:$0xff]
  %v67 = vld [vmem:[%s1 + $0xa0] sm:$0xff]
  %v68 = vld [vmem:[%s1 + $0xa8] sm:$0xff]
  %v69 = vld [vmem:[%s1 + $0xb0] sm:$0xff]
  %v70 = vld [vmem:[%s1 + $0xb8] sm:$0xff]
  %v71 = vld [vmem:[%s1 + $0xc0] sm:$0xff]
  %v72 = vld [vmem:[%s1 + $0xc8] sm:$0xff]
  %v73 = vld [vmem:[%s1 + $0xd0] sm:$0xff]
  %v74 = vld [vmem:[%s1 + $0xd8] sm:$0xff]
  %v75 = vld [vmem:[%s1 + $0xe0] sm:$0xff]
  %v76 = vld [vmem:[%s1 + $0xe8] sm:$0xff]
  %v77 = vld [vmem:[%s1 + $0xf0] sm:$0xff]
  %v78 = vld [vmem:[%s1 + $0xf8] sm:$0xff]
  %v79 = vld [vmem:[%s2] sm:$0x3]
  %v81 = vlaneseq
  %v82 = vshrl.u32 %v81, 7
  %v83 = vsub.s32 0, %v82
  %v84 = vrot.slane %v79, %v83
  %v85 = vlaneseq
  %v86 = vshrl.u32 %v85, 7
  %v87 = vsub.s32 1, %v86
  %v88 = vrot.slane %v79, %v87
  %91 = vmatprep.subr.mxu0 %v48
  %92 = vmatpush1.msra.mxu0 %v47
  %93 = vmatprep.subr.mxu0 %v50
  %94 = vmatpush1.msra.mxu0 %v49
  %95 = vmatprep.subr.mxu0 %v52
  %96 = vmatpush1.msra.mxu0 %v51
  %97 = vmatprep.subr.mxu0 %v54
  %98 = vmatpush1.msra.mxu0 %v53
  %99 = vmatprep.subr.mxu0 %v56
  %100 = vmatpush1.msra.mxu0 %v55
  %101 = vmatprep.subr.mxu0 %v58
  %102 = vmatpush1.msra.mxu0 %v57
  %103 = vmatprep.subr.mxu0 %v60
  %104 = vmatpush1.msra.mxu0 %v59
  %105 = vmatprep.subr.mxu0 %v62
  %106 = vmatpush1.msra.mxu0 %v61
  %107 = vmatprep.subr.mxu0 %v64
  %108 = vmatpush1.msra.mxu0 %v63
  %109 = vmatprep.subr.mxu0 %v66
  %110 = vmatpush1.msra.mxu0 %v65
  %111 = vmatprep.subr.mxu0 %v68
  %112 = vmatpush1.msra.mxu0 %v67
  %113 = vmatprep.subr.mxu0 %v70
  %114 = vmatpush1.msra.mxu0 %v69
  %115 = vmatprep.subr.mxu0 %v72
  %116 = vmatpush1.msra.mxu0 %v71
  %117 = vmatprep.subr.mxu0 %v74
  %118 = vmatpush1.msra.mxu0 %v73
  %119 = vmatprep.subr.mxu0 %v76
  %120 = vmatpush1.msra.mxu0 %v75
  %121 = vmatprep.subr.mxu0 %v78
  %122 = vmatpush1.msra.mxu0 %v77
  %123 = vmatprep.subr.mxu0 0.0
  %124 = vmatpush1.msra.mxu0 0.0
  %125 = vmatprep.subr.mxu0 0.0
  %126 = vmatpush1.msra.mxu0 0.0
  %127 = vmatprep.subr.mxu0 0.0
  %128 = vmatpush1.msra.mxu0 0.0
  %129 = vmatprep.subr.mxu0 0.0
  %130 = vmatpush1.msra.mxu0 0.0
  %131 = vmatprep.subr.mxu0 0.0
  %132 = vmatpush1.msra.mxu0 0.0
  %133 = vmatprep.subr.mxu0 0.0
  %134 = vmatpush1.msra.mxu0 0.0
  %135 = vmatprep.subr.mxu0 0.0
  %136 = vmatpush1.msra.mxu0 0.0
  %137 = vmatprep.subr.mxu0 0.0
  %138 = vmatpush1.msra.mxu0 0.0
  %139 = vmatprep.subr.mxu0 0.0
  %140 = vmatpush1.msra.mxu0 0.0
  %141 = vmatprep.subr.mxu0 0.0
  %142 = vmatpush1.msra.mxu0 0.0
  %143 = vmatprep.subr.mxu0 0.0
  %144 = vmatpush1.msra.mxu0 0.0
  %145 = vmatprep.subr.mxu0 0.0
  %146 = vmatpush1.msra.mxu0 0.0
  %147 = vmatprep.subr.mxu0 0.0
  %148 = vmatpush1.msra.mxu0 0.0
  %149 = vmatprep.subr.mxu0 0.0
  %150 = vmatpush1.msra.mxu0 0.0
  %151 = vmatprep.subr.mxu0 0.0
  %152 = vmatpush1.msra.mxu0 0.0
  %153 = vmatprep.subr.mxu0 0.0
  %154 = vmatpush1.msra.mxu0 0.0
  %155 = vmatprep.mubr.f32.mxu0 0.0
  %156 = vmatmul.mubr.f32.gmra.mrb[0].mxu0 %v46
  %v157 = vpop.f32.mrb[0].mxu0
  %v158 = vadd.f32 %v84, %v157
  %v159 = vpop.f32.mrb[0].mxu0
  %v160 = vadd.f32 %v88, %v159
  %161 = vdwg.mxu0
  %v162 = vmax.f32 %v158, 0.0
  %v163 = vmax.f32 %v160, 0.0
  %v164 = vld [vmem:[%s3] sm:$0xff]
  %v165 = vld [vmem:[%s3 + $0x8] sm:$0xff]
  %v166 = vld [vmem:[%s3 + $0x10] sm:$0xff]
  %v167 = vld [vmem:[%s3 + $0x18] sm:$0xff]
  %v168 = vld [vmem:[%s3 + $0x20] sm:$0xff]
  %v169 = vld [vmem:[%s3 + $0x28] sm:$0xff]
  %v170 = vld [vmem:[%s3 + $0x30] sm:$0xff]
  %v171 = vld [vmem:[%s3 + $0x38] sm:$0xff]
  %v172 = vld [vmem:[%s3 + $0x40] sm:$0xff]
  %v173 = vld [vmem:[%s3 + $0x48] sm:$0xff]
  %v174 = vld [vmem:[%s3 + $0x50] sm:$0xff]
  %v175 = vld [vmem:[%s3 + $0x58] sm:$0xff]
  %v176 = vld [vmem:[%s3 + $0x60] sm:$0xff]
  %v177 = vld [vmem:[%s3 + $0x68] sm:$0xff]
  %v178 = vld [vmem:[%s3 + $0x70] sm:$0xff]
  %v179 = vld [vmem:[%s3 + $0x78] sm:$0xff]
  %v180 = vld [vmem:[%s3 + $0x80] sm:$0xff]
  %v181 = vld [vmem:[%s3 + $0x88] sm:$0xff]
  %v182 = vld [vmem:[%s3 + $0x90] sm:$0xff]
  %v183 = vld [vmem:[%s3 + $0x98] sm:$0xff]
  %v184 = vld [vmem:[%s3 + $0xa0] sm:$0xff]
  %v185 = vld [vmem:[%s3 + $0xa8] sm:$0xff]
  %v186 = vld [vmem:[%s3 + $0xb0] sm:$0xff]
  %v187 = vld [vmem:[%s3 + $0xb8] sm:$0xff]
  %v188 = vld [vmem:[%s3 + $0xc0] sm:$0xff]
  %v189 = vld [vmem:[%s3 + $0xc8] sm:$0xff]
  %v190 = vld [vmem:[%s3 + $0xd0] sm:$0xff]
  %v191 = vld [vmem:[%s3 + $0xd8] sm:$0xff]
  %v192 = vld [vmem:[%s3 + $0xe0] sm:$0xff]
  %v193 = vld [vmem:[%s3 + $0xe8] sm:$0xff]
  %v194 = vld [vmem:[%s3 + $0xf0] sm:$0xff]
  %v195 = vld [vmem:[%s3 + $0xf8] sm:$0xff]
  %v196 = vld [vmem:[%s3 + $0x100] sm:$0xff]
  %v197 = vld [vmem:[%s3 + $0x108] sm:$0xff]
  %v198 = vld [vmem:[%s3 + $0x110] sm:$0xff]
  %v199 = vld [vmem:[%s3 + $0x118] sm:$0xff]
  %v200 = vld [vmem:[%s3 + $0x120] sm:$0xff]
  %v201 = vld [vmem:[%s3 + $0x128] sm:$0xff]
  %v202 = vld [vmem:[%s3 + $0x130] sm:$0xff]
  %v203 = vld [vmem:[%s3 + $0x138] sm:$0xff]
  %v204 = vld [vmem:[%s3 + $0x140] sm:$0xff]
  %v205 = vld [vmem:[%s3 + $0x148] sm:$0xff]
  %v206 = vld [vmem:[%s3 + $0x150] sm:$0xff]
  %v207 = vld [vmem:[%s3 + $0x158] sm:$0xff]
  %v208 = vld [vmem:[%s3 + $0x160] sm:$0xff]
  %v209 = vld [vmem:[%s3 + $0x168] sm:$0xff]
  %v210 = vld [vmem:[%s3 + $0x170] sm:$0xff]
  %v211 = vld [vmem:[%s3 + $0x178] sm:$0xff]
  %v212 = vld [vmem:[%s3 + $0x180] sm:$0xff]
  %v213 = vld [vmem:[%s3 + $0x188] sm:$0xff]
  %v214 = vld [vmem:[%s3 + $0x190] sm:$0xff]
  %v215 = vld [vmem:[%s3 + $0x198] sm:$0xff]
  %v216 = vld [vmem:[%s3 + $0x1a0] sm:$0xff]
  %v217 = vld [vmem:[%s3 + $0x1a8] sm:$0xff]
  %v218 = vld [vmem:[%s3 + $0x1b0] sm:$0xff]
  %v219 = vld [vmem:[%s3 + $0x1b8] sm:$0xff]
  %v220 = vld [vmem:[%s3 + $0x1c0] sm:$0xff]
  %v221 = vld [vmem:[%s3 + $0x1c8] sm:$0xff]
  %v222 = vld [vmem:[%s3 + $0x1d0] sm:$0xff]
  %v223 = vld [vmem:[%s3 + $0x1d8] sm:$0xff]
  %v224 = vld [vmem:[%s3 + $0x1e0] sm:$0xff]
  %v225 = vld [vmem:[%s3 + $0x1e8] sm:$0xff]
  %v226 = vld [vmem:[%s3 + $0x1f0] sm:$0xff]
  %v227 = vld [vmem:[%s3 + $0x1f8] sm:$0xff]
  %v228 = vld [vmem:[%s4] sm:$0x3]
  %v230 = vlaneseq
  %v231 = vshrl.u32 %v230, 7
  %v232 = vsub.s32 0, %v231
  %v233 = vrot.slane %v228, %v232
  %v234 = vlaneseq
  %v235 = vshrl.u32 %v234, 7
  %v236 = vsub.s32 1, %v235
  %v237 = vrot.slane %v228, %v236
  %240 = vmatprep.subr.mxu0 %v165
  %241 = vmatpush1.msra.mxu0 %v164
  %242 = vmatprep.subr.mxu0 %v167
  %243 = vmatpush1.msra.mxu0 %v166
  %244 = vmatprep.subr.mxu0 %v169
  %245 = vmatpush1.msra.mxu0 %v168
  %246 = vmatprep.subr.mxu0 %v171
  %247 = vmatpush1.msra.mxu0 %v170
  %248 = vmatprep.subr.mxu0 %v173
  %249 = vmatpush1.msra.mxu0 %v172
  %250 = vmatprep.subr.mxu0 %v175
  %251 = vmatpush1.msra.mxu0 %v174
  %252 = vmatprep.subr.mxu0 %v177
  %253 = vmatpush1.msra.mxu0 %v176
  %254 = vmatprep.subr.mxu0 %v179
  %255 = vmatpush1.msra.mxu0 %v178
  %256 = vmatprep.subr.mxu0 %v181
  %257 = vmatpush1.msra.mxu0 %v180
  %258 = vmatprep.subr.mxu0 %v183
  %259 = vmatpush1.msra.mxu0 %v182
  %260 = vmatprep.subr.mxu0 %v185
  %261 = vmatpush1.msra.mxu0 %v184
  %262 = vmatprep.subr.mxu0 %v187
  %263 = vmatpush1.msra.mxu0 %v186
  %264 = vmatprep.subr.mxu0 %v189
  %265 = vmatpush1.msra.mxu0 %v188
  %266 = vmatprep.subr.mxu0 %v191
  %267 = vmatpush1.msra.mxu0 %v190
  %268 = vmatprep.subr.mxu0 %v193
  %269 = vmatpush1.msra.mxu0 %v192
  %270 = vmatprep.subr.mxu0 %v195
  %271 = vmatpush1.msra.mxu0 %v194
  %272 = vmatprep.subr.mxu0 %v197
  %273 = vmatpush1.msra.mxu0 %v196
  %274 = vmatprep.subr.mxu0 %v199
  %275 = vmatpush1.msra.mxu0 %v198
  %276 = vmatprep.subr.mxu0 %v201
  %277 = vmatpush1.msra.mxu0 %v200
  %278 = vmatprep.subr.mxu0 %v203
  %279 = vmatpush1.msra.mxu0 %v202
  %280 = vmatprep.subr.mxu0 %v205
  %281 = vmatpush1.msra.mxu0 %v204
  %282 = vmatprep.subr.mxu0 %v207
  %283 = vmatpush1.msra.mxu0 %v206
  %284 = vmatprep.subr.mxu0 %v209
  %285 = vmatpush1.msra.mxu0 %v208
  %286 = vmatprep.subr.mxu0 %v211
  %287 = vmatpush1.msra.mxu0 %v210
  %288 = vmatprep.subr.mxu0 %v213
  %289 = vmatpush1.msra.mxu0 %v212
  %290 = vmatprep.subr.mxu0 %v215
  %291 = vmatpush1.msra.mxu0 %v214
  %292 = vmatprep.subr.mxu0 %v217
  %293 = vmatpush1.msra.mxu0 %v216
  %294 = vmatprep.subr.mxu0 %v219
  %295 = vmatpush1.msra.mxu0 %v218
  %296 = vmatprep.subr.mxu0 %v221
  %297 = vmatpush1.msra.mxu0 %v220
  %298 = vmatprep.subr.mxu0 %v223
  %299 = vmatpush1.msra.mxu0 %v222
  %300 = vmatprep.subr.mxu0 %v225
  %301 = vmatpush1.msra.mxu0 %v224
  %302 = vmatprep.subr.mxu0 %v227
  %303 = vmatpush1.msra.mxu0 %v226
  %304 = vmatprep.mubr.f32.mxu0 %v163
  %305 = vmatmul.mubr.f32.gmra.mrb[0].mxu0 %v162
  %v306 = vpop.f32.mrb[0].mxu0
  %v307 = vadd.f32 %v233, %v306
  %v308 = vpop.f32.mrb[0].mxu0
  %v309 = vadd.f32 %v237, %v308
  %310 = vdwg.mxu0
  %v311 = vmax.f32 %v307, 0.0
  %v312 = vmax.f32 %v309, 0.0
  %v313 = vld [vmem:[%s5] sm:$0xff]
  %v314 = vld [vmem:[%s5 + $0x8] sm:$0xff]
  %v315 = vld [vmem:[%s5 + $0x10] sm:$0xff]
  %v316 = vld [vmem:[%s5 + $0x18] sm:$0xff]
  %v317 = vld [vmem:[%s5 + $0x20] sm:$0xff]
  %v318 = vld [vmem:[%s5 + $0x28] sm:$0xff]
  %v319 = vld [vmem:[%s5 + $0x30] sm:$0xff]
  %v320 = vld [vmem:[%s5 + $0x38] sm:$0xff]
  %v321 = vld [vmem:[%s5 + $0x40] sm:$0xff]
  %v322 = vld [vmem:[%s5 + $0x48] sm:$0xff]
  %v323 = vld [vmem:[%s5 + $0x50] sm:$0xff]
  %v324 = vld [vmem:[%s5 + $0x58] sm:$0xff]
  %v325 = vld [vmem:[%s5 + $0x60] sm:$0xff]
  %v326 = vld [vmem:[%s5 + $0x68] sm:$0xff]
  %v327 = vld [vmem:[%s5 + $0x70] sm:$0xff]
  %v328 = vld [vmem:[%s5 + $0x78] sm:$0xff]
  %v329 = vld [vmem:[%s5 + $0x80] sm:$0xff]
  %v330 = vld [vmem:[%s5 + $0x88] sm:$0xff]
  %v331 = vld [vmem:[%s5 + $0x90] sm:$0xff]
  %v332 = vld [vmem:[%s5 + $0x98] sm:$0xff]
  %v333 = vld [vmem:[%s5 + $0xa0] sm:$0xff]
  %v334 = vld [vmem:[%s5 + $0xa8] sm:$0xff]
  %v335 = vld [vmem:[%s5 + $0xb0] sm:$0xff]
  %v336 = vld [vmem:[%s5 + $0xb8] sm:$0xff]
  %v337 = vld [vmem:[%s5 + $0xc0] sm:$0xff]
  %v338 = vld [vmem:[%s5 + $0xc8] sm:$0xff]
  %v339 = vld [vmem:[%s5 + $0xd0] sm:$0xff]
  %v340 = vld [vmem:[%s5 + $0xd8] sm:$0xff]
  %v341 = vld [vmem:[%s5 + $0xe0] sm:$0xff]
  %v342 = vld [vmem:[%s5 + $0xe8] sm:$0xff]
  %v343 = vld [vmem:[%s5 + $0xf0] sm:$0xff]
  %v344 = vld [vmem:[%s5 + $0xf8] sm:$0xff]
  %v345 = vld [vmem:[%s6] sm:$0x1]
  %v347 = vlaneseq
  %v348 = vshrl.u32 %v347, 7
  %v349 = vsub.s32 0, %v348
  %v350 = vrot.slane %v345, %v349
  %352 = vmatprep.subr.mxu0 0.0
  %353 = vmatpush1.msra.mxu0 %v313
  %354 = vmatprep.subr.mxu0 0.0
  %355 = vmatpush1.msra.mxu0 %v314
  %356 = vmatprep.subr.mxu0 0.0
  %357 = vmatpush1.msra.mxu0 %v315
  %358 = vmatprep.subr.mxu0 0.0
  %359 = vmatpush1.msra.mxu0 %v316
  %360 = vmatprep.subr.mxu0 0.0
  %361 = vmatpush1.msra.mxu0 %v317
  %362 = vmatprep.subr.mxu0 0.0
  %363 = vmatpush1.msra.mxu0 %v318
  %364 = vmatprep.subr.mxu0 0.0
  %365 = vmatpush1.msra.mxu0 %v319
  %366 = vmatprep.subr.mxu0 0.0
  %367 = vmatpush1.msra.mxu0 %v320
  %368 = vmatprep.subr.mxu0 0.0
  %369 = vmatpush1.msra.mxu0 %v321
  %370 = vmatprep.subr.mxu0 0.0
  %371 = vmatpush1.msra.mxu0 %v322
  %372 = vmatprep.subr.mxu0 0.0
  %373 = vmatpush1.msra.mxu0 %v323
  %374 = vmatprep.subr.mxu0 0.0
  %375 = vmatpush1.msra.mxu0 %v324
  %376 = vmatprep.subr.mxu0 0.0
  %377 = vmatpush1.msra.mxu0 %v325
  %378 = vmatprep.subr.mxu0 0.0
  %379 = vmatpush1.msra.mxu0 %v326
  %380 = vmatprep.subr.mxu0 0.0
  %381 = vmatpush1.msra.mxu0 %v327
  %382 = vmatprep.subr.mxu0 0.0
  %383 = vmatpush1.msra.mxu0 %v328
  %384 = vmatprep.subr.mxu0 0.0
  %385 = vmatpush1.msra.mxu0 %v329
  %386 = vmatprep.subr.mxu0 0.0
  %387 = vmatpush1.msra.mxu0 %v330
  %388 = vmatprep.subr.mxu0 0.0
  %389 = vmatpush1.msra.mxu0 %v331
  %390 = vmatprep.subr.mxu0 0.0
  %391 = vmatpush1.msra.mxu0 %v332
  %392 = vmatprep.subr.mxu0 0.0
  %393 = vmatpush1.msra.mxu0 %v333
  %394 = vmatprep.subr.mxu0 0.0
  %395 = vmatpush1.msra.mxu0 %v334
  %396 = vmatprep.subr.mxu0 0.0
  %397 = vmatpush1.msra.mxu0 %v335
  %398 = vmatprep.subr.mxu0 0.0
  %399 = vmatpush1.msra.mxu0 %v336
  %400 = vmatprep.subr.mxu0 0.0
  %401 = vmatpush1.msra.mxu0 %v337
  %402 = vmatprep.subr.mxu0 0.0
  %403 = vmatpush1.msra.mxu0 %v338
  %404 = vmatprep.subr.mxu0 0.0
  %405 = vmatpush1.msra.mxu0 %v339
  %406 = vmatprep.subr.mxu0 0.0
  %407 = vmatpush1.msra.mxu0 %v340
  %408 = vmatprep.subr.mxu0 0.0
  %409 = vmatpush1.msra.mxu0 %v341
  %410 = vmatprep.subr.mxu0 0.0
  %411 = vmatpush1.msra.mxu0 %v342
  %412 = vmatprep.subr.mxu0 0.0
  %413 = vmatpush1.msra.mxu0 %v343
  %414 = vmatprep.subr.mxu0 0.0
  %415 = vmatpush1.msra.mxu0 %v344
  %416 = vmatprep.mubr.f32.mxu0 %v312
  %417 = vmatmul.mubr.f32.gmra.mrb[0].mxu0 %v311
  %v418 = vpop.f32.mrb[0].mxu0
  %v419 = vadd.f32 %v350, %v418
  %v420 = vpop.f32.mrb[0].mxu0
  %421 = vdwg.mxu0
  %v422 = vld [vmem:[%s7] sm:$0xff]
  %v423 = vld [vmem:[%s7 + $0x8] sm:$0xff]
  %v424 = vld [vmem:[%s7 + $0x10] sm:$0xff]
  %v425 = vld [vmem:[%s7 + $0x18] sm:$0xff]
  %v426 = vld [vmem:[%s7 + $0x20] sm:$0xff]
  %v427 = vld [vmem:[%s7 + $0x28] sm:$0xff]
  %v428 = vld [vmem:[%s7 + $0x30] sm:$0xff]
  %v429 = vld [vmem:[%s7 + $0x38] sm:$0xff]
  %v430 = vld [vmem:[%s8] sm:$0x1]
  %v432 = vlaneseq
  %v433 = vshrl.u32 %v432, 7
  %v434 = vsub.s32 0, %v433
  %v435 = vrot.slane %v430, %v434
  %vm437 = vcmask 523264
  %v439 = vsel %vm437, %v419, 0
  %441 = vmatprep.subr.mxu0 0.0
  %442 = vmatpush1.msra.mxu0 %v422
  %443 = vmatprep.subr.mxu0 0.0
  %444 = vmatpush1.msra.mxu0 %v423
  %445 = vmatprep.subr.mxu0 0.0
  %446 = vmatpush1.msra.mxu0 %v424
  %447 = vmatprep.subr.mxu0 0.0
  %448 = vmatpush1.msra.mxu0 %v425
  %449 = vmatprep.subr.mxu0 0.0
  %450 = vmatpush1.msra.mxu0 %v426
  %451 = vmatprep.subr.mxu0 0.0
  %452 = vmatpush1.msra.mxu0 %v427
  %453 = vmatprep.subr.mxu0 0.0
  %454 = vmatpush1.msra.mxu0 %v428
  %455 = vmatprep.subr.mxu0 0.0
  %456 = vmatpush1.msra.mxu0 %v429
  %457 = vmatprep.subr.mxu0 0.0
  %458 = vmatpush1.msra.mxu0 0.0
  %459 = vmatprep.subr.mxu0 0.0
  %460 = vmatpush1.msra.mxu0 0.0
  %461 = vmatprep.subr.mxu0 0.0
  %462 = vmatpush1.msra.mxu0 0.0
  %463 = vmatprep.subr.mxu0 0.0
  %464 = vmatpush1.msra.mxu0 0.0
  %465 = vmatprep.subr.mxu0 0.0
  %466 = vmatpush1.msra.mxu0 0.0
  %467 = vmatprep.subr.mxu0 0.0
  %468 = vmatpush1.msra.mxu0 0.0
  %469 = vmatprep.subr.mxu0 0.0
  %470 = vmatpush1.msra.mxu0 0.0
  %471 = vmatprep.subr.mxu0 0.0
  %472 = vmatpush1.msra.mxu0 0.0
  %473 = vmatprep.subr.mxu0 0.0
  %474 = vmatpush1.msra.mxu0 0.0
  %475 = vmatprep.subr.mxu0 0.0
  %476 = vmatpush1.msra.mxu0 0.0
  %477 = vmatprep.subr.mxu0 0.0
  %478 = vmatpush1.msra.mxu0 0.0
  %479 = vmatprep.subr.mxu0 0.0
  %480 = vmatpush1.msra.mxu0 0.0
  %481 = vmatprep.subr.mxu0 0.0
  %482 = vmatpush1.msra.mxu0 0.0
  %483 = vmatprep.subr.mxu0 0.0
  %484 = vmatpush1.msra.mxu0 0.0
  %485 = vmatprep.subr.mxu0 0.0
  %486 = vmatpush1.msra.mxu0 0.0
  %487 = vmatprep.subr.mxu0 0.0
  %488 = vmatpush1.msra.mxu0 0.0
  %489 = vmatprep.subr.mxu0 0.0
  %490 = vmatpush1.msra.mxu0 0.0
  %491 = vmatprep.subr.mxu0 0.0
  %492 = vmatpush1.msra.mxu0 0.0
  %493 = vmatprep.subr.mxu0 0.0
  %494 = vmatpush1.msra.mxu0 0.0
  %495 = vmatprep.subr.mxu0 0.0
  %496 = vmatpush1.msra.mxu0 0.0
  %497 = vmatprep.subr.mxu0 0.0
  %498 = vmatpush1.msra.mxu0 0.0
  %499 = vmatprep.subr.mxu0 0.0
  %500 = vmatpush1.msra.mxu0 0.0
  %501 = vmatprep.subr.mxu0 0.0
  %502 = vmatpush1.msra.mxu0 0.0
  %503 = vmatprep.subr.mxu0 0.0
  %504 = vmatpush1.msra.mxu0 0.0
  %505 = vmatprep.mubr.f32.mxu0 0.0
  %506 = vmatmul.mubr.f32.gmra.mrb[0].mxu0 %v439
  %v507 = vpop.f32.mrb[0].mxu0
  %v508 = vadd.f32 %v435, %v507
  %v509 = vpop.f32.mrb[0].mxu0
  %510 = vdwg.mxu0
  %v511 = vmax.f32 %v508, 0.0
  %v512 = vld [vmem:[%s9] sm:$0xff]
  %v513 = vld [vmem:[%s9 + $0x8] sm:$0xff]
  %v514 = vld [vmem:[%s9 + $0x10] sm:$0xff]
  %v515 = vld [vmem:[%s9 + $0x18] sm:$0xff]
  %v516 = vld [vmem:[%s10] sm:$0x1]
  %v518 = vlaneseq
  %v519 = vshrl.u32 %v518, 7
  %v520 = vsub.s32 0, %v519
  %v521 = vrot.slane %v516, %v520
  %vm523 = vcmask 261120
  %v525 = vsel %vm523, %v511, 0
  %527 = vmatprep.subr.mxu0 0.0
  %528 = vmatpush1.msra.mxu0 %v512
  %529 = vmatprep.subr.mxu0 0.0
  %530 = vmatpush1.msra.mxu0 %v513
  %531 = vmatprep.subr.mxu0 0.0
  %532 = vmatpush1.msra.mxu0 %v514
  %533 = vmatprep.subr.mxu0 0.0
  %534 = vmatpush1.msra.mxu0 %v515
  %535 = vmatprep.subr.mxu0 0.0
  %536 = vmatpush1.msra.mxu0 0.0
  %537 = vmatprep.subr.mxu0 0.0
  %538 = vmatpush1.msra.mxu0 0.0
  %539 = vmatprep.subr.mxu0 0.0
  %540 = vmatpush1.msra.mxu0 0.0
  %541 = vmatprep.subr.mxu0 0.0
  %542 = vmatpush1.msra.mxu0 0.0
  %543 = vmatprep.subr.mxu0 0.0
  %544 = vmatpush1.msra.mxu0 0.0
  %545 = vmatprep.subr.mxu0 0.0
  %546 = vmatpush1.msra.mxu0 0.0
  %547 = vmatprep.subr.mxu0 0.0
  %548 = vmatpush1.msra.mxu0 0.0
  %549 = vmatprep.subr.mxu0 0.0
  %550 = vmatpush1.msra.mxu0 0.0
  %551 = vmatprep.subr.mxu0 0.0
  %552 = vmatpush1.msra.mxu0 0.0
  %553 = vmatprep.subr.mxu0 0.0
  %554 = vmatpush1.msra.mxu0 0.0
  %555 = vmatprep.subr.mxu0 0.0
  %556 = vmatpush1.msra.mxu0 0.0
  %557 = vmatprep.subr.mxu0 0.0
  %558 = vmatpush1.msra.mxu0 0.0
  %559 = vmatprep.subr.mxu0 0.0
  %560 = vmatpush1.msra.mxu0 0.0
  %561 = vmatprep.subr.mxu0 0.0
  %562 = vmatpush1.msra.mxu0 0.0
  %563 = vmatprep.subr.mxu0 0.0
  %564 = vmatpush1.msra.mxu0 0.0
  %565 = vmatprep.subr.mxu0 0.0
  %566 = vmatpush1.msra.mxu0 0.0
  %567 = vmatprep.subr.mxu0 0.0
  %568 = vmatpush1.msra.mxu0 0.0
  %569 = vmatprep.subr.mxu0 0.0
  %570 = vmatpush1.msra.mxu0 0.0
  %571 = vmatprep.subr.mxu0 0.0
  %572 = vmatpush1.msra.mxu0 0.0
  %573 = vmatprep.subr.mxu0 0.0
  %574 = vmatpush1.msra.mxu0 0.0
  %575 = vmatprep.subr.mxu0 0.0
  %576 = vmatpush1.msra.mxu0 0.0
  %577 = vmatprep.subr.mxu0 0.0
  %578 = vmatpush1.msra.mxu0 0.0
  %579 = vmatprep.subr.mxu0 0.0
  %580 = vmatpush1.msra.mxu0 0.0
  %581 = vmatprep.subr.mxu0 0.0
  %582 = vmatpush1.msra.mxu0 0.0
  %583 = vmatprep.subr.mxu0 0.0
  %584 = vmatpush1.msra.mxu0 0.0
  %585 = vmatprep.subr.mxu0 0.0
  %586 = vmatpush1.msra.mxu0 0.0
  %587 = vmatprep.subr.mxu0 0.0
  %588 = vmatpush1.msra.mxu0 0.0
  %589 = vmatprep.subr.mxu0 0.0
  %590 = vmatpush1.msra.mxu0 0.0
  %591 = vmatprep.mubr.f32.mxu0 0.0
  %592 = vmatmul.mubr.f32.gmra.mrb[0].mxu0 %v525
  %v593 = vpop.f32.mrb[0].mxu0
  %v594 = vadd.f32 %v521, %v593
  %v595 = vpop.f32.mrb[0].mxu0
  %596 = vdwg.mxu0
  %v597 = vmax.f32 %v594, 0.0
  %v598 = vld [vmem:[%s11] sm:$0xff]
  %v599 = vld [vmem:[%s11 + $0x8] sm:$0xff]
  %v600 = vld [vmem:[%s11 + $0x10] sm:$0xff]
  %v601 = vld [vmem:[%s11 + $0x18] sm:$0xff]
  %v602 = vld [vmem:[#allocation2] sm:$0x1]
  %v604 = vlaneseq
  %v605 = vshrl.u32 %v604, 7
  %v606 = vsub.s32 0, %v605
  %v607 = vrot.slane %v602, %v606
  %v610 = vsel %vm523, %v597, 0
  %612 = vmatprep.subr.mxu0 0.0
  %613 = vmatpush1.msra.mxu0 %v598
  %614 = vmatprep.subr.mxu0 0.0
  %615 = vmatpush1.msra.mxu0 %v599
  %616 = vmatprep.subr.mxu0 0.0
  %617 = vmatpush1.msra.mxu0 %v600
  %618 = vmatprep.subr.mxu0 0.0
  %619 = vmatpush1.msra.mxu0 %v601
  %620 = vmatprep.subr.mxu0 0.0
  %621 = vmatpush1.msra.mxu0 0.0
  %622 = vmatprep.subr.mxu0 0.0
  %623 = vmatpush1.msra.mxu0 0.0
  %624 = vmatprep.subr.mxu0 0.0
  %625 = vmatpush1.msra.mxu0 0.0
  %626 = vmatprep.subr.mxu0 0.0
  %627 = vmatpush1.msra.mxu0 0.0
  %628 = vmatprep.subr.mxu0 0.0
  %629 = vmatpush1.msra.mxu0 0.0
  %630 = vmatprep.subr.mxu0 0.0
  %631 = vmatpush1.msra.mxu0 0.0
  %632 = vmatprep.subr.mxu0 0.0
  %633 = vmatpush1.msra.mxu0 0.0
  %634 = vmatprep.subr.mxu0 0.0
  %635 = vmatpush1.msra.mxu0 0.0
  %636 = vmatprep.subr.mxu0 0.0
  %637 = vmatpush1.msra.mxu0 0.0
  %638 = vmatprep.subr.mxu0 0.0
  %639 = vmatpush1.msra.mxu0 0.0
  %640 = vmatprep.subr.mxu0 0.0
  %641 = vmatpush1.msra.mxu0 0.0
  %642 = vmatprep.subr.mxu0 0.0
  %643 = vmatpush1.msra.mxu0 0.0
  %644 = vmatprep.subr.mxu0 0.0
  %645 = vmatpush1.msra.mxu0 0.0
  %646 = vmatprep.subr.mxu0 0.0
  %647 = vmatpush1.msra.mxu0 0.0
  %648 = vmatprep.subr.mxu0 0.0
  %649 = vmatpush1.msra.mxu0 0.0
  %650 = vmatprep.subr.mxu0 0.0
  %651 = vmatpush1.msra.mxu0 0.0
  %652 = vmatprep.subr.mxu0 0.0
  %653 = vmatpush1.msra.mxu0 0.0
  %654 = vmatprep.subr.mxu0 0.0
  %655 = vmatpush1.msra.mxu0 0.0
  %656 = vmatprep.subr.mxu0 0.0
  %657 = vmatpush1.msra.mxu0 0.0
  %658 = vmatprep.subr.mxu0 0.0
  %659 = vmatpush1.msra.mxu0 0.0
  %660 = vmatprep.subr.mxu0 0.0
  %661 = vmatpush1.msra.mxu0 0.0
  %662 = vmatprep.subr.mxu0 0.0
  %663 = vmatpush1.msra.mxu0 0.0
  %664 = vmatprep.subr.mxu0 0.0
  %665 = vmatpush1.msra.mxu0 0.0
  %666 = vmatprep.subr.mxu0 0.0
  %667 = vmatpush1.msra.mxu0 0.0
  %668 = vmatprep.subr.mxu0 0.0
  %669 = vmatpush1.msra.mxu0 0.0
  %670 = vmatprep.subr.mxu0 0.0
  %671 = vmatpush1.msra.mxu0 0.0
  %672 = vmatprep.subr.mxu0 0.0
  %673 = vmatpush1.msra.mxu0 0.0
  %674 = vmatprep.subr.mxu0 0.0
  %675 = vmatpush1.msra.mxu0 0.0
  %676 = vmatprep.mubr.f32.mxu0 0.0
  %677 = vmatmul.mubr.f32.gmra.mrb[0].mxu0 %v610
  %v678 = vpop.f32.mrb[0].mxu0
  %v679 = vadd.f32 %v607, %v678
  %v680 = vpop.f32.mrb[0].mxu0
  %681 = vdwg.mxu0
  %vm682 = vcmask 1024
  %683 = vst.msk [vmem:[%s13] sm:$0x3] %vm682, %v679
  // Predicated region
  $region54: #{slicemlp_forward.1} parent=0 // pred_check
    _
  $region55: #{slicemlp_forward.1} parent=0 // pred_check_branch
    %685 = sbr.rel (0) target = $region57
  $region56: #{slicemlp_forward.1} parent=0 // pred_region
    _
  $region57: #{slicemlp_forward.1} parent=0 // pred_fallthru
    _
  // Predicated region
  $region58: #{slicemlp_forward.1} parent=0 // pred_check
    _
  $region59: #{slicemlp_forward.1} parent=0 // pred_check_branch
    %687 = sbr.rel (0) target = $region61
  $region60: #{slicemlp_forward.1} parent=0 // pred_region
    _
  $region61: #{slicemlp_forward.1} parent=0 // pred_fallthru
    _

</llo_original>
